<compile_context>
chip_gen: v7x
topology: tpu7x:2x2x1
jax: 0.10.0
libtpu: 0.0.40
codegen_flags: <defaults>
</compile_context>

<pallas_src>
import jax
import jax.numpy as jnp
from jax.experimental import pallas as pl
from jax.experimental.pallas import tpu as pltpu

HIDDEN_SIZES = [256, 256]
LN_EPS = 1e-5


def _round_up(v, m):
    return ((v + m - 1) // m) * m


def _layernorm_onepass(h, gamma, beta, eps=LN_EPS):
    # nn.LayerNorm over last dim (biased variance, affine), single pass over h.
    mu = jnp.mean(h, axis=-1, keepdims=True)
    ms = jnp.mean(h * h, axis=-1, keepdims=True)
    var = jnp.maximum(ms - mu * mu, 0.0)
    return (h - mu) * jax.lax.rsqrt(var + eps) * gamma + beta


def mlp_kernel(x_ref,
               w1_ref, b1_ref, g1_ref, be1_ref,
               w2_ref, b2_ref, g2_ref, be2_ref,
               w3_ref, b3_ref,
               o_ref):
    # Layer 1: Linear -> LayerNorm -> ReLU  (bf16 MXU operands, f32 accum/LN)
    x = x_ref[...]  # already bf16 from the wrapper
    h = jnp.dot(x, w1_ref[...], preferred_element_type=jnp.float32) + b1_ref[...]
    h = _layernorm_onepass(h, g1_ref[...], be1_ref[...])
    h = jnp.maximum(h, 0.0).astype(jnp.bfloat16)

    # Layer 2: Linear -> LayerNorm -> ReLU
    h = jnp.dot(h, w2_ref[...], preferred_element_type=jnp.float32) + b2_ref[...]
    h = _layernorm_onepass(h, g2_ref[...], be2_ref[...])
    h = jnp.maximum(h, 0.0).astype(jnp.bfloat16)

    # Output layer: Linear (activation=None). Output tile is lane-dense (padded to 128).
    o_ref[...] = (jnp.dot(h, w3_ref[...], preferred_element_type=jnp.float32)
                  + b3_ref[...]).astype(o_ref.dtype)


def network_forward(x, params, *, batch_tile=None):
    """x: (B, input_size) float32. params: dict of f32 weights/biases/LN params."""
    B, d_in = x.shape
    h1, h2 = HIDDEN_SIZES
    d_out = params["w3"].shape[1]

    # Lane-dense padded feature dims (zero padding does not change the math).
    d_in_p = max(_round_up(d_in, 128), 128)
    d_out_p = max(_round_up(d_out, 128), 128)

    # Batch tiling: one grid step for small batches, 512-row tiles otherwise.
    if batch_tile is None:
        batch_tile = min(_round_up(B, 8), 512)
    batch_tile = max(8, _round_up(batch_tile, 8))
    B_p = _round_up(B, batch_tile)

    # Pad + cast input to bf16 in one wrapper op (halves x HBM traffic); pad weights
    # once and store bf16 (halves weight DMA).
    x_p = jnp.zeros((B_p, d_in_p), jnp.bfloat16).at[:B, :d_in].set(
        x.astype(jnp.bfloat16))
    w1 = jnp.zeros((d_in_p, h1), jnp.float32).at[:d_in, :].set(
        params["w1"]).astype(jnp.bfloat16)
    w2 = params["w2"].astype(jnp.bfloat16)
    w3 = jnp.zeros((h2, d_out_p), jnp.float32).at[:, :d_out].set(
        params["w3"]).astype(jnp.bfloat16)
    b3 = jnp.zeros((1, d_out_p), jnp.float32).at[:, :d_out].set(params["b3"])

    grid = (B_p // batch_tile,)

    def batch_map(i):
        return (i, 0)

    def full_map(i):
        return (0, 0)

    in_specs = [
        pl.BlockSpec((batch_tile, d_in_p), batch_map),   # x (bf16, padded)
        pl.BlockSpec((d_in_p, h1), full_map),            # w1 (bf16, padded rows)
        pl.BlockSpec((1, h1), full_map),                 # b1
        pl.BlockSpec((1, h1), full_map),                 # ln1 gamma
        pl.BlockSpec((1, h1), full_map),                 # ln1 beta
        pl.BlockSpec((h1, h2), full_map),                # w2 (bf16)
        pl.BlockSpec((1, h2), full_map),                 # b2
        pl.BlockSpec((1, h2), full_map),                 # ln2 gamma
        pl.BlockSpec((1, h2), full_map),                 # ln2 beta
        pl.BlockSpec((h2, d_out_p), full_map),           # w3 (bf16, padded cols)
        pl.BlockSpec((1, d_out_p), full_map),            # b3 (padded)
    ]
    out_specs = pl.BlockSpec((batch_tile, d_out_p), batch_map)

    out = pl.pallas_call(
        mlp_kernel,
        out_shape=jax.ShapeDtypeStruct((B_p, d_out_p), jnp.float32),
        grid_spec=pltpu.PrefetchScalarGridSpec(
            num_scalar_prefetch=0,
            grid=grid,
            in_specs=in_specs,
            out_specs=out_specs,
        ),
        compiler_params=pltpu.CompilerParams(
            dimension_semantics=("parallel",)),
    )(x_p,
      w1, params["b1"], params["g1"], params["be1"],
      w2, params["b2"], params["g2"], params["be2"],
      w3, b3)

    return out[:B, :d_out]


def init_params(key, input_size, output_size, hidden_sizes):
    """nn.Linear-style uniform(-1/sqrt(fan_in), 1/sqrt(fan_in)); LayerNorm gamma=1, beta=0."""
    h1, h2 = hidden_sizes
    ks = jax.random.split(key, 6)

    def linear(kw, kb, fan_in, fan_out):
        bound = 1.0 / jnp.sqrt(float(fan_in))
        w = jax.random.uniform(kw, (fan_in, fan_out), jnp.float32, -bound, bound)
        b = jax.random.uniform(kb, (1, fan_out), jnp.float32, -bound, bound)
        return w, b

    w1, b1 = linear(ks[0], ks[1], input_size, h1)
    w2, b2 = linear(ks[2], ks[3], h1, h2)
    w3, b3 = linear(ks[4], ks[5], h2, output_size)

    return dict(
        w1=w1, b1=b1, g1=jnp.ones((1, h1), jnp.float32), be1=jnp.zeros((1, h1), jnp.float32),
        w2=w2, b2=b2, g2=jnp.ones((1, h2), jnp.float32), be2=jnp.zeros((1, h2), jnp.float32),
        w3=w3, b3=b3,
    )


def _layernorm_ref(h, gamma, beta, eps=LN_EPS):
    # Textbook two-pass LayerNorm (matches nn.LayerNorm).
    mu = jnp.mean(h, axis=-1, keepdims=True)
    var = jnp.mean((h - mu) ** 2, axis=-1, keepdims=True)
    return (h - mu) * jax.lax.rsqrt(var + eps) * gamma + beta


def reference_forward(x, p):
    # Mirrors the kernel's dtype policy (bf16 matmul operands, f32 accumulation / LN).
    def mm(a, w):
        return jnp.dot(a.astype(jnp.bfloat16), w.astype(jnp.bfloat16),
                       preferred_element_type=jnp.float32)

    h = mm(x, p["w1"]) + p["b1"]
    h = _layernorm_ref(h, p["g1"], p["be1"])
    h = jnp.maximum(h, 0.0)
    h = mm(h, p["w2"]) + p["b2"]
    h = _layernorm_ref(h, p["g2"], p["be2"])
    h = jnp.maximum(h, 0.0)
    return mm(h, p["w3"]) + p["b3"]


if __name__ == "__main__":
    # Inverse-dynamics style shapes: 12 input features (q, qdot), 6 output torques.
    input_size, output_size = 12, 6
    batch = 16

    key = jax.random.PRNGKey(0)
    k_x, k_p = jax.random.split(key)
    x = jax.random.normal(k_x, (batch, input_size), jnp.float32)
    params = init_params(k_p, input_size, output_size, HIDDEN_SIZES)

    out = network_forward(x, params)   # small batch -> single grid step
    out = jax.block_until_ready(out)

    ref = reference_forward(x, params)
    assert out.shape == (batch, output_size)
    assert jnp.allclose(out, ref, atol=1e-3, rtol=1e-3)

    print("KERNEL_OK")
</pallas_src>

<mosaic_0001>
module attributes {stable_mosaic.version = 11 : i64} {
  func.func @mlp_kernel(%arg0: i32, %arg1: memref<16x128xbf16, #tpu.memory_space<vmem>>, %arg2: memref<128x256xbf16, #tpu.memory_space<vmem>>, %arg3: memref<1x256xf32, #tpu.memory_space<vmem>>, %arg4: memref<1x256xf32, #tpu.memory_space<vmem>>, %arg5: memref<1x256xf32, #tpu.memory_space<vmem>>, %arg6: memref<256x256xbf16, #tpu.memory_space<vmem>>, %arg7: memref<1x256xf32, #tpu.memory_space<vmem>>, %arg8: memref<1x256xf32, #tpu.memory_space<vmem>>, %arg9: memref<1x256xf32, #tpu.memory_space<vmem>>, %arg10: memref<256x128xbf16, #tpu.memory_space<vmem>>, %arg11: memref<1x128xf32, #tpu.memory_space<vmem>>, %arg12: memref<16x128xf32, #tpu.memory_space<vmem>>) attributes {dimension_semantics = [#tpu.dimension_semantics<parallel>], iteration_bounds = array<i64: 1>, scalar_prefetch = 0 : i64, scratch_operands = 0 : i64, tpu.core_type = #tpu.core_type<tc>, window_params = [{transform_indices = @transform_0, window_bounds = array<i64: 16, 128>}, {pipeline_mode = #tpu.pipeline_mode<synchronous>, transform_indices = @transform_1, window_bounds = array<i64: 128, 256>}, {pipeline_mode = #tpu.pipeline_mode<synchronous>, transform_indices = @transform_2, window_bounds = array<i64: 1, 256>}, {pipeline_mode = #tpu.pipeline_mode<synchronous>, transform_indices = @transform_3, window_bounds = array<i64: 1, 256>}, {pipeline_mode = #tpu.pipeline_mode<synchronous>, transform_indices = @transform_4, window_bounds = array<i64: 1, 256>}, {pipeline_mode = #tpu.pipeline_mode<synchronous>, transform_indices = @transform_5, window_bounds = array<i64: 256, 256>}, {pipeline_mode = #tpu.pipeline_mode<synchronous>, transform_indices = @transform_6, window_bounds = array<i64: 1, 256>}, {pipeline_mode = #tpu.pipeline_mode<synchronous>, transform_indices = @transform_7, window_bounds = array<i64: 1, 256>}, {pipeline_mode = #tpu.pipeline_mode<synchronous>, transform_indices = @transform_8, window_bounds = array<i64: 1, 256>}, {pipeline_mode = #tpu.pipeline_mode<synchronous>, transform_indices = @transform_9, window_bounds = array<i64: 256, 128>}, {pipeline_mode = #tpu.pipeline_mode<synchronous>, transform_indices = @transform_10, window_bounds = array<i64: 1, 128>}, {transform_indices = @transform_11, window_bounds = array<i64: 16, 128>}]} {
    %c0 = arith.constant 0 : index
    %c0_0 = arith.constant 0 : index
    %0 = vector.load %arg1[%c0, %c0_0] : memref<16x128xbf16, #tpu.memory_space<vmem>>, vector<16x128xbf16>
    %c0_1 = arith.constant 0 : index
    %c0_2 = arith.constant 0 : index
    %1 = vector.load %arg2[%c0_1, %c0_2] : memref<128x256xbf16, #tpu.memory_space<vmem>>, vector<128x256xbf16>
    %cst = arith.constant dense<0.000000e+00> : vector<16x256xf32>
    %2 = tpu.matmul %0, %1, %cst {dimension_numbers = #tpu.dot_dimension_numbers<[1], [0], [0], [1], [0, 0, 1, 1], [], []>} : vector<16x128xbf16>, vector<128x256xbf16>, vector<16x256xf32> -> vector<16x256xf32>
    %c0_3 = arith.constant 0 : index
    %c0_4 = arith.constant 0 : index
    %3 = vector.load %arg3[%c0_3, %c0_4] : memref<1x256xf32, #tpu.memory_space<vmem>>, vector<1x256xf32>
    %4 = vector.broadcast %3 : vector<1x256xf32> to vector<16x256xf32>
    %5 = arith.addf %2, %4 : vector<16x256xf32>
    %c0_5 = arith.constant 0 : index
    %c0_6 = arith.constant 0 : index
    %6 = vector.load %arg4[%c0_5, %c0_6] : memref<1x256xf32, #tpu.memory_space<vmem>>, vector<1x256xf32>
    %c0_7 = arith.constant 0 : index
    %c0_8 = arith.constant 0 : index
    %7 = vector.load %arg5[%c0_7, %c0_8] : memref<1x256xf32, #tpu.memory_space<vmem>>, vector<1x256xf32>
    %cst_9 = arith.constant dense<0.000000e+00> : vector<16xf32>
    %8 = vector.multi_reduction <add>, %5, %cst_9 [1] : vector<16x256xf32> to vector<16xf32>
    %9 = vector.shape_cast %8 : vector<16xf32> to vector<16x1xf32>
    %cst_10 = arith.constant 2.560000e+02 : f32
    %10 = vector.broadcast %cst_10 : f32 to vector<16x1xf32>
    %11 = arith.divf %9, %10 : vector<16x1xf32>
    %12 = arith.mulf %5, %5 : vector<16x256xf32>
    %cst_11 = arith.constant dense<0.000000e+00> : vector<16xf32>
    %13 = vector.multi_reduction <add>, %12, %cst_11 [1] : vector<16x256xf32> to vector<16xf32>
    %14 = vector.shape_cast %13 : vector<16xf32> to vector<16x1xf32>
    %cst_12 = arith.constant 2.560000e+02 : f32
    %15 = vector.broadcast %cst_12 : f32 to vector<16x1xf32>
    %16 = arith.divf %14, %15 : vector<16x1xf32>
    %17 = arith.mulf %11, %11 : vector<16x1xf32>
    %18 = arith.subf %16, %17 : vector<16x1xf32>
    %cst_13 = arith.constant 0.000000e+00 : f32
    %19 = vector.broadcast %cst_13 : f32 to vector<16x1xf32>
    %20 = arith.maximumf %18, %19 : vector<16x1xf32>
    %21 = vector.broadcast %11 : vector<16x1xf32> to vector<16x256xf32>
    %22 = arith.subf %5, %21 : vector<16x256xf32>
    %cst_14 = arith.constant 9.99999974E-6 : f32
    %23 = vector.broadcast %cst_14 : f32 to vector<16x1xf32>
    %24 = arith.addf %20, %23 : vector<16x1xf32>
    %25 = math.rsqrt %24 : vector<16x1xf32>
    %26 = vector.broadcast %25 : vector<16x1xf32> to vector<16x256xf32>
    %27 = arith.mulf %22, %26 : vector<16x256xf32>
    %28 = vector.broadcast %6 : vector<1x256xf32> to vector<16x256xf32>
    %29 = arith.mulf %27, %28 : vector<16x256xf32>
    %30 = vector.broadcast %7 : vector<1x256xf32> to vector<16x256xf32>
    %31 = arith.addf %29, %30 : vector<16x256xf32>
    %cst_15 = arith.constant 0.000000e+00 : f32
    %32 = vector.broadcast %cst_15 : f32 to vector<16x256xf32>
    %33 = arith.maximumf %31, %32 : vector<16x256xf32>
    %34 = arith.truncf %33 : vector<16x256xf32> to vector<16x256xbf16>
    %c0_16 = arith.constant 0 : index
    %c0_17 = arith.constant 0 : index
    %35 = vector.load %arg6[%c0_16, %c0_17] : memref<256x256xbf16, #tpu.memory_space<vmem>>, vector<256x256xbf16>
    %cst_18 = arith.constant dense<0.000000e+00> : vector<16x256xf32>
    %36 = tpu.matmul %34, %35, %cst_18 {dimension_numbers = #tpu.dot_dimension_numbers<[1], [0], [0], [1], [0, 0, 1, 1], [], []>} : vector<16x256xbf16>, vector<256x256xbf16>, vector<16x256xf32> -> vector<16x256xf32>
    %c0_19 = arith.constant 0 : index
    %c0_20 = arith.constant 0 : index
    %37 = vector.load %arg7[%c0_19, %c0_20] : memref<1x256xf32, #tpu.memory_space<vmem>>, vector<1x256xf32>
    %38 = vector.broadcast %37 : vector<1x256xf32> to vector<16x256xf32>
    %39 = arith.addf %36, %38 : vector<16x256xf32>
    %c0_21 = arith.constant 0 : index
    %c0_22 = arith.constant 0 : index
    %40 = vector.load %arg8[%c0_21, %c0_22] : memref<1x256xf32, #tpu.memory_space<vmem>>, vector<1x256xf32>
    %c0_23 = arith.constant 0 : index
    %c0_24 = arith.constant 0 : index
    %41 = vector.load %arg9[%c0_23, %c0_24] : memref<1x256xf32, #tpu.memory_space<vmem>>, vector<1x256xf32>
    %cst_25 = arith.constant dense<0.000000e+00> : vector<16xf32>
    %42 = vector.multi_reduction <add>, %39, %cst_25 [1] : vector<16x256xf32> to vector<16xf32>
    %43 = vector.shape_cast %42 : vector<16xf32> to vector<16x1xf32>
    %cst_26 = arith.constant 2.560000e+02 : f32
    %44 = vector.broadcast %cst_26 : f32 to vector<16x1xf32>
    %45 = arith.divf %43, %44 : vector<16x1xf32>
    %46 = arith.mulf %39, %39 : vector<16x256xf32>
    %cst_27 = arith.constant dense<0.000000e+00> : vector<16xf32>
    %47 = vector.multi_reduction <add>, %46, %cst_27 [1] : vector<16x256xf32> to vector<16xf32>
    %48 = vector.shape_cast %47 : vector<16xf32> to vector<16x1xf32>
    %cst_28 = arith.constant 2.560000e+02 : f32
    %49 = vector.broadcast %cst_28 : f32 to vector<16x1xf32>
    %50 = arith.divf %48, %49 : vector<16x1xf32>
    %51 = arith.mulf %45, %45 : vector<16x1xf32>
    %52 = arith.subf %50, %51 : vector<16x1xf32>
    %cst_29 = arith.constant 0.000000e+00 : f32
    %53 = vector.broadcast %cst_29 : f32 to vector<16x1xf32>
    %54 = arith.maximumf %52, %53 : vector<16x1xf32>
    %55 = vector.broadcast %45 : vector<16x1xf32> to vector<16x256xf32>
    %56 = arith.subf %39, %55 : vector<16x256xf32>
    %cst_30 = arith.constant 9.99999974E-6 : f32
    %57 = vector.broadcast %cst_30 : f32 to vector<16x1xf32>
    %58 = arith.addf %54, %57 : vector<16x1xf32>
    %59 = math.rsqrt %58 : vector<16x1xf32>
    %60 = vector.broadcast %59 : vector<16x1xf32> to vector<16x256xf32>
    %61 = arith.mulf %56, %60 : vector<16x256xf32>
    %62 = vector.broadcast %40 : vector<1x256xf32> to vector<16x256xf32>
    %63 = arith.mulf %61, %62 : vector<16x256xf32>
    %64 = vector.broadcast %41 : vector<1x256xf32> to vector<16x256xf32>
    %65 = arith.addf %63, %64 : vector<16x256xf32>
    %cst_31 = arith.constant 0.000000e+00 : f32
    %66 = vector.broadcast %cst_31 : f32 to vector<16x256xf32>
    %67 = arith.maximumf %65, %66 : vector<16x256xf32>
    %68 = arith.truncf %67 : vector<16x256xf32> to vector<16x256xbf16>
    %c0_32 = arith.constant 0 : index
    %c0_33 = arith.constant 0 : index
    %69 = vector.load %arg10[%c0_32, %c0_33] : memref<256x128xbf16, #tpu.memory_space<vmem>>, vector<256x128xbf16>
    %cst_34 = arith.constant dense<0.000000e+00> : vector<16x128xf32>
    %70 = tpu.matmul %68, %69, %cst_34 {dimension_numbers = #tpu.dot_dimension_numbers<[1], [0], [0], [1], [0, 0, 1, 1], [], []>} : vector<16x256xbf16>, vector<256x128xbf16>, vector<16x128xf32> -> vector<16x128xf32>
    %c0_35 = arith.constant 0 : index
    %c0_36 = arith.constant 0 : index
    %71 = vector.load %arg11[%c0_35, %c0_36] : memref<1x128xf32, #tpu.memory_space<vmem>>, vector<1x128xf32>
    %72 = vector.broadcast %71 : vector<1x128xf32> to vector<16x128xf32>
    %73 = arith.addf %70, %72 : vector<16x128xf32>
    %c0_37 = arith.constant 0 : index
    %c0_38 = arith.constant 0 : index
    %74 = vector.load %arg12[%c0_37, %c0_38] : memref<16x128xf32, #tpu.memory_space<vmem>>, vector<16x128xf32>
    tpu.vector_store %arg12[%c0_37, %c0_38], %73 {strides = array<i32>} : memref<16x128xf32, #tpu.memory_space<vmem>>, vector<16x128xf32>,
    return
  }
  func.func @transform_0(%arg0: i32) -> (i32, i32) {
    %c0_i32 = arith.constant 0 : i32
    %c0_i32_0 = arith.constant 0 : i32
    return %arg0, %c0_i32 : i32, i32
  }
  func.func @transform_1(%arg0: i32) -> (i32, i32) {
    %c0_i32 = arith.constant 0 : i32
    %c0_i32_0 = arith.constant 0 : i32
    %c0_i32_1 = arith.constant 0 : i32
    return %c0_i32, %c0_i32_0 : i32, i32
  }
  func.func @transform_2(%arg0: i32) -> (i32, i32) {
    %c0_i32 = arith.constant 0 : i32
    %c0_i32_0 = arith.constant 0 : i32
    %c0_i32_1 = arith.constant 0 : i32
    return %c0_i32, %c0_i32_0 : i32, i32
  }
  func.func @transform_3(%arg0: i32) -> (i32, i32) {
    %c0_i32 = arith.constant 0 : i32
    %c0_i32_0 = arith.constant 0 : i32
    %c0_i32_1 = arith.constant 0 : i32
    return %c0_i32, %c0_i32_0 : i32, i32
  }
  func.func @transform_4(%arg0: i32) -> (i32, i32) {
    %c0_i32 = arith.constant 0 : i32
    %c0_i32_0 = arith.constant 0 : i32
    %c0_i32_1 = arith.constant 0 : i32
    return %c0_i32, %c0_i32_0 : i32, i32
  }
  func.func @transform_5(%arg0: i32) -> (i32, i32) {
    %c0_i32 = arith.constant 0 : i32
    %c0_i32_0 = arith.constant 0 : i32
    %c0_i32_1 = arith.constant 0 : i32
    return %c0_i32, %c0_i32_0 : i32, i32
  }
  func.func @transform_6(%arg0: i32) -> (i32, i32) {
    %c0_i32 = arith.constant 0 : i32
    %c0_i32_0 = arith.constant 0 : i32
    %c0_i32_1 = arith.constant 0 : i32
    return %c0_i32, %c0_i32_0 : i32, i32
  }
  func.func @transform_7(%arg0: i32) -> (i32, i32) {
    %c0_i32 = arith.constant 0 : i32
    %c0_i32_0 = arith.constant 0 : i32
    %c0_i32_1 = arith.constant 0 : i32
    return %c0_i32, %c0_i32_0 : i32, i32
  }
  func.func @transform_8(%arg0: i32) -> (i32, i32) {
    %c0_i32 = arith.constant 0 : i32
    %c0_i32_0 = arith.constant 0 : i32
    %c0_i32_1 = arith.constant 0 : i32
    return %c0_i32, %c0_i32_0 : i32, i32
  }
  func.func @transform_9(%arg0: i32) -> (i32, i32) {
    %c0_i32 = arith.constant 0 : i32
    %c0_i32_0 = arith.constant 0 : i32
    %c0_i32_1 = arith.constant 0 : i32
    return %c0_i32, %c0_i32_0 : i32, i32
  }
  func.func @transform_10(%arg0: i32) -> (i32, i32) {
    %c0_i32 = arith.constant 0 : i32
    %c0_i32_0 = arith.constant 0 : i32
    %c0_i32_1 = arith.constant 0 : i32
    return %c0_i32, %c0_i32_0 : i32, i32
  }
  func.func @transform_11(%arg0: i32) -> (i32, i32) {
    %c0_i32 = arith.constant 0 : i32
    %c0_i32_0 = arith.constant 0 : i32
    return %arg0, %c0_i32 : i32, i32
  }
}

</mosaic_0001>

<llo_original>
// kernel: tpu_custom_call.1
$region0: #{tpu_custom_call.1}
  #allocation0 [shape = 'u32[]', space=smem, size = 0x4, offset = 0x4, fixed_abs, tag = 'smem constant byte address 0x4 - core index']
  #allocation1 [shape = 'u32[144,128]{1,0:T(1,128)}', space=vmem, size = 0x12000, scoped, tag = 'internal scratch']
  %s0 = inlined_call_operand.hbm [shape: bf16[16,128], index: 0, kind: input, shape index: {}]
  %s1 = inlined_call_operand.hbm [shape: bf16[128,256], index: 1, kind: input, shape index: {}]
  %s2 = inlined_call_operand.vmem [shape: f32[1,256], index: 2, kind: input, shape index: {}]
  %s3 = inlined_call_operand.vmem [shape: f32[1,256], index: 3, kind: input, shape index: {}]
  %s4 = inlined_call_operand.vmem [shape: f32[1,256], index: 4, kind: input, shape index: {}]
  %s5 = inlined_call_operand.hbm [shape: bf16[256,256], index: 5, kind: input, shape index: {}]
  %s6 = inlined_call_operand.vmem [shape: f32[1,256], index: 6, kind: input, shape index: {}]
  %s7 = inlined_call_operand.vmem [shape: f32[1,256], index: 7, kind: input, shape index: {}]
  %s8 = inlined_call_operand.vmem [shape: f32[1,256], index: 8, kind: input, shape index: {}]
  %s9 = inlined_call_operand.hbm [shape: bf16[256,128], index: 9, kind: input, shape index: {}]
  %s10 = inlined_call_operand.vmem [shape: f32[1,128], index: 10, kind: input, shape index: {}]
  %s11 = inlined_call_operand.hbm [shape: f32[16,128], index: 11, kind: output, shape index: {}]
  %s12 = sld [smem:[#allocation0]]
  $region70: #{tpu_custom_call.1} parent=0
    _
  %s14 = ssub.s32 1, %s12
  %s15 = scalar_select 0, %s14, %s12
  $region1: #{tpu_custom_call.1} parent=0
    #allocation2 [shape = 'u8[4096]{0}', space=vmem, size = 0x1000, scoped, tag = 'input window, operand 0, single buffered']
    #allocation3 [shape = 's32[1]{0}', space=sflag, size = 0x4, scoped, tag = 'scoped memory for tpu_custom_call.1']
    #allocation4 [shape = 's32[1]{0}', space=sflag, size = 0x4, scoped, tag = 'scoped memory for tpu_custom_call.1']
    #allocation5 [shape = 'u8[65536]{0}', space=vmem, size = 0x10000, scoped, tag = 'input window, operand 1, single buffered']
    #allocation6 [shape = 's32[1]{0}', space=sflag, size = 0x4, scoped, tag = 'scoped memory for tpu_custom_call.1']
    #allocation7 [shape = 'u8[131072]{0}', space=vmem, size = 0x20000, scoped, tag = 'input window, operand 5, single buffered']
    #allocation8 [shape = 'u8[65536]{0}', space=vmem, size = 0x10000, scoped, tag = 'input window, operand 9, single buffered']
    #allocation9 [shape = 's32[1]{0}', space=sflag, size = 0x4, scoped, tag = 'scoped memory for tpu_custom_call.1']
    #allocation10 [shape = 'u8[8192]{0}', space=vmem, size = 0x2000, scoped, tag = 'output window, operand 0, single buffered']
    %16 = vsyncpa [#allocation3], 0
    %17 = vsyncpa [#allocation6], 0
    %18 = vsyncpa [#allocation9], 0
    %19 = vsyncpa [#allocation4], 0
    // Predicated region
    $region2: #{tpu_custom_call.1} parent=1 // pred_check
      _
    $region3: #{tpu_custom_call.1} parent=1 // pred_check_branch
      %21 = sbr.rel (0) target = $region5
    $region4: #{tpu_custom_call.1} parent=1 // pred_region
      %s23 = ssub.s32 128, 128
      %24 = vsyncadd [#allocation3], %s23
      %s25 = sshll.u32 [#allocation2], 4
      %s26 = int_to_ptr.vmem [resolvable:$true] %s25
      %31 = dma.hbm_to_vmem [thread:$0]  %s0, 128, %s26, [#allocation3], 64, 64, 4
    $region5: #{tpu_custom_call.1} parent=1 // pred_fallthru
      _
    // Predicated region
    $region6: #{tpu_custom_call.1} parent=1 // pred_check
      _
    $region7: #{tpu_custom_call.1} parent=1 // pred_check_branch
      %33 = sbr.rel (0) target = $region9
    $region8: #{tpu_custom_call.1} parent=1 // pred_region
      %s35 = ssub.s32 2048, 2048
      %36 = vsyncadd [#allocation6], %s35
      %s37 = sshll.u32 [#allocation5], 4
      %s38 = int_to_ptr.vmem [resolvable:$true] %s37
      %43 = dma.hbm_to_vmem [thread:$0]  %s1, 2048, %s38, [#allocation6], 128, 128, 8
    $region9: #{tpu_custom_call.1} parent=1 // pred_fallthru
      _
    // Predicated region
    $region10: #{tpu_custom_call.1} parent=1 // pred_check
      _
    $region11: #{tpu_custom_call.1} parent=1 // pred_check_branch
      %45 = sbr.rel (0) target = $region13
    $region12: #{tpu_custom_call.1} parent=1 // pred_region
      _
    $region13: #{tpu_custom_call.1} parent=1 // pred_fallthru
      _
    // Predicated region
    $region14: #{tpu_custom_call.1} parent=1 // pred_check
      _
    $region15: #{tpu_custom_call.1} parent=1 // pred_check_branch
      %47 = sbr.rel (0) target = $region17
    $region16: #{tpu_custom_call.1} parent=1 // pred_region
      _
    $region17: #{tpu_custom_call.1} parent=1 // pred_fallthru
      _
    // Predicated region
    $region18: #{tpu_custom_call.1} parent=1 // pred_check
      _
    $region19: #{tpu_custom_call.1} parent=1 // pred_check_branch
      %49 = sbr.rel (0) target = $region21
    $region20: #{tpu_custom_call.1} parent=1 // pred_region
      _
    $region21: #{tpu_custom_call.1} parent=1 // pred_fallthru
      _
    // Predicated region
    $region22: #{tpu_custom_call.1} parent=1 // pred_check
      _
    $region23: #{tpu_custom_call.1} parent=1 // pred_check_branch
      %51 = sbr.rel (0) target = $region25
    $region24: #{tpu_custom_call.1} parent=1 // pred_region
      %s53 = ssub.s32 4096, 4096
      %54 = vsyncadd [#allocation6], %s53
      %s55 = sshll.u32 [#allocation7], 4
      %s56 = int_to_ptr.vmem [resolvable:$true] %s55
      %61 = dma.hbm_to_vmem [thread:$0]  %s5, 4096, %s56, [#allocation6], 128, 128, 8
    $region25: #{tpu_custom_call.1} parent=1 // pred_fallthru
      _
    // Predicated region
    $region26: #{tpu_custom_call.1} parent=1 // pred_check
      _
    $region27: #{tpu_custom_call.1} parent=1 // pred_check_branch
      %63 = sbr.rel (0) target = $region29
    $region28: #{tpu_custom_call.1} parent=1 // pred_region
      _
    $region29: #{tpu_custom_call.1} parent=1 // pred_fallthru
      _
    // Predicated region
    $region30: #{tpu_custom_call.1} parent=1 // pred_check
      _
    $region31: #{tpu_custom_call.1} parent=1 // pred_check_branch
      %65 = sbr.rel (0) target = $region33
    $region32: #{tpu_custom_call.1} parent=1 // pred_region
      _
    $region33: #{tpu_custom_call.1} parent=1 // pred_fallthru
      _
    // Predicated region
    $region34: #{tpu_custom_call.1} parent=1 // pred_check
      _
    $region35: #{tpu_custom_call.1} parent=1 // pred_check_branch
      %67 = sbr.rel (0) target = $region37
    $region36: #{tpu_custom_call.1} parent=1 // pred_region
      _
    $region37: #{tpu_custom_call.1} parent=1 // pred_fallthru
      _
    // Predicated region
    $region38: #{tpu_custom_call.1} parent=1 // pred_check
      _
    $region39: #{tpu_custom_call.1} parent=1 // pred_check_branch
      %69 = sbr.rel (0) target = $region41
    $region40: #{tpu_custom_call.1} parent=1 // pred_region
      %s71 = ssub.s32 2048, 2048
      %72 = vsyncadd [#allocation9], %s71
      %s73 = sshll.u32 [#allocation8], 4
      %s74 = int_to_ptr.vmem [resolvable:$true] %s73
      %79 = dma.hbm_to_vmem [thread:$0]  %s9, 2048, %s74, [#allocation9], 64, 64, 4
    $region41: #{tpu_custom_call.1} parent=1 // pred_fallthru
      _
    // Predicated region
    $region42: #{tpu_custom_call.1} parent=1 // pred_check
      _
    $region43: #{tpu_custom_call.1} parent=1 // pred_check_branch
      %81 = sbr.rel (0) target = $region45
    $region44: #{tpu_custom_call.1} parent=1 // pred_region
      _
    $region45: #{tpu_custom_call.1} parent=1 // pred_fallthru
      _
    // Predicated region
    $region46: #{tpu_custom_call.1} parent=1 // pred_check
      _
    $region47: #{tpu_custom_call.1} parent=1 // pred_check_branch
      %83 = sbr.rel (0) target = $region49
    $region48: #{tpu_custom_call.1} parent=1 // pred_region
      %84 = dma.done [#allocation3], 128
    $region49: #{tpu_custom_call.1} parent=1 // pred_fallthru
      _
    // Predicated region
    $region50: #{tpu_custom_call.1} parent=1 // pred_check
      _
    $region51: #{tpu_custom_call.1} parent=1 // pred_check_branch
      %86 = sbr.rel (0) target = $region53
    $region52: #{tpu_custom_call.1} parent=1 // pred_region
      %87 = dma.done [#allocation6], 2048
    $region53: #{tpu_custom_call.1} parent=1 // pred_fallthru
      _
    // Predicated region
    $region54: #{tpu_custom_call.1} parent=1 // pred_check
      _
    $region55: #{tpu_custom_call.1} parent=1 // pred_check_branch
      %89 = sbr.rel (0) target = $region57
    $region56: #{tpu_custom_call.1} parent=1 // pred_region
      %90 = dma.done [#allocation6], 4096
    $region57: #{tpu_custom_call.1} parent=1 // pred_fallthru
      _
    // Predicated region
    $region58: #{tpu_custom_call.1} parent=1 // pred_check
      _
    $region59: #{tpu_custom_call.1} parent=1 // pred_check_branch
      %92 = sbr.rel (0) target = $region61
    $region60: #{tpu_custom_call.1} parent=1 // pred_region
      %93 = dma.done [#allocation9], 2048
    $region61: #{tpu_custom_call.1} parent=1 // pred_fallthru
      _
    %v95 = vld [vmem:[#allocation2] sm:$0xf]
    %v96 = vld [vmem:[#allocation2 + $0x4] sm:$0xf]
    %v97 = vld [vmem:[#allocation5] sm:$0xff]
    %v98 = vld [vmem:[#allocation5 + $0x8] sm:$0xff]
    %v99 = vld [vmem:[#allocation5 + $0x10] sm:$0xff]
    %v100 = vld [vmem:[#allocation5 + $0x18] sm:$0xff]
    %v101 = vld [vmem:[#allocation5 + $0x20] sm:$0xff]
    %v102 = vld [vmem:[#allocation5 + $0x28] sm:$0xff]
    %v103 = vld [vmem:[#allocation5 + $0x30] sm:$0xff]
    %v104 = vld [vmem:[#allocation5 + $0x38] sm:$0xff]
    %v105 = vld [vmem:[#allocation5 + $0x40] sm:$0xff]
    %v106 = vld [vmem:[#allocation5 + $0x48] sm:$0xff]
    %v107 = vld [vmem:[#allocation5 + $0x50] sm:$0xff]
    %v108 = vld [vmem:[#allocation5 + $0x58] sm:$0xff]
    %v109 = vld [vmem:[#allocation5 + $0x60] sm:$0xff]
    %v110 = vld [vmem:[#allocation5 + $0x68] sm:$0xff]
    %v111 = vld [vmem:[#allocation5 + $0x70] sm:$0xff]
    %v112 = vld [vmem:[#allocation5 + $0x78] sm:$0xff]
    %v113 = vld [vmem:[%s2] sm:$0x3]
    %v115 = vlaneseq
    %v116 = vshrl.u32 %v115, 7
    %v117 = vsub.s32 0, %v116
    %v118 = vrot.slane %v113, %v117
    %v119 = vlaneseq
    %v120 = vshrl.u32 %v119, 7
    %v121 = vsub.s32 1, %v120
    %v122 = vrot.slane %v113, %v121
    %v127 = vunpack.c.l.b16 %v95
    %v128 = vunpack.c.l.b16 %v96
    %v129 = vpack.c.b16 %v128, %v127
    %v147 = vunpack.c.l.b16 %v97
    %v148 = vunpack.c.h.b16 %v97
    %v149 = vunpack.c.l.b16 %v98
    %v150 = vunpack.c.h.b16 %v98
    %v151 = vunpack.c.l.b16 %v99
    %v152 = vunpack.c.h.b16 %v99
    %v153 = vunpack.c.l.b16 %v100
    %v154 = vunpack.c.h.b16 %v100
    %v155 = vunpack.c.l.b16 %v101
    %v156 = vunpack.c.h.b16 %v101
    %v157 = vunpack.c.l.b16 %v102
    %v158 = vunpack.c.h.b16 %v102
    %v159 = vunpack.c.l.b16 %v103
    %v160 = vunpack.c.h.b16 %v103
    %v161 = vunpack.c.l.b16 %v104
    %v162 = vunpack.c.h.b16 %v104
    %v163 = vunpack.c.l.b16 %v105
    %v164 = vunpack.c.h.b16 %v105
    %v165 = vunpack.c.l.b16 %v106
    %v166 = vunpack.c.h.b16 %v106
    %v167 = vunpack.c.l.b16 %v107
    %v168 = vunpack.c.h.b16 %v107
    %v169 = vunpack.c.l.b16 %v108
    %v170 = vunpack.c.h.b16 %v108
    %v171 = vunpack.c.l.b16 %v109
    %v172 = vunpack.c.h.b16 %v109
    %v173 = vunpack.c.l.b16 %v110
    %v174 = vunpack.c.h.b16 %v110
    %v175 = vunpack.c.l.b16 %v111
    %v176 = vunpack.c.h.b16 %v111
    %v177 = vunpack.c.l.b16 %v112
    %v178 = vunpack.c.h.b16 %v112
    %v179 = vpack.c.b16 %v149, %v147
    %v180 = vpack.c.b16 %v150, %v148
    %v181 = vpack.c.b16 %v153, %v151
    %v182 = vpack.c.b16 %v154, %v152
    %v183 = vpack.c.b16 %v157, %v155
    %v184 = vpack.c.b16 %v158, %v156
    %v185 = vpack.c.b16 %v161, %v159
    %v186 = vpack.c.b16 %v162, %v160
    %v187 = vpack.c.b16 %v165, %v163
    %v188 = vpack.c.b16 %v166, %v164
    %v189 = vpack.c.b16 %v169, %v167
    %v190 = vpack.c.b16 %v170, %v168
    %v191 = vpack.c.b16 %v173, %v171
    %v192 = vpack.c.b16 %v174, %v172
    %v193 = vpack.c.b16 %v177, %v175
    %v194 = vpack.c.b16 %v178, %v176
    %211 = vmatprep.subr.bf16.mxu0 %v180
    %212 = vmatpush1.bf16.msra.mxu0 %v179
    %213 = vmatprep.subr.bf16.mxu0 %v182
    %214 = vmatpush1.bf16.msra.mxu0 %v181
    %215 = vmatprep.subr.bf16.mxu0 %v184
    %216 = vmatpush1.bf16.msra.mxu0 %v183
    %217 = vmatprep.subr.bf16.mxu0 %v186
    %218 = vmatpush1.bf16.msra.mxu0 %v185
    %219 = vmatprep.subr.bf16.mxu0 %v188
    %220 = vmatpush1.bf16.msra.mxu0 %v187
    %221 = vmatprep.subr.bf16.mxu0 %v190
    %222 = vmatpush1.bf16.msra.mxu0 %v189
    %223 = vmatprep.subr.bf16.mxu0 %v192
    %224 = vmatpush1.bf16.msra.mxu0 %v191
    %225 = vmatprep.subr.bf16.mxu0 %v194
    %226 = vmatpush1.bf16.msra.mxu0 %v193
    %227 = vmatprep.subr.bf16.mxu0 0
    %228 = vmatpush1.bf16.msra.mxu0 0
    %229 = vmatprep.subr.bf16.mxu0 0
    %230 = vmatpush1.bf16.msra.mxu0 0
    %231 = vmatprep.subr.bf16.mxu0 0
    %232 = vmatpush1.bf16.msra.mxu0 0
    %233 = vmatprep.subr.bf16.mxu0 0
    %234 = vmatpush1.bf16.msra.mxu0 0
    %235 = vmatprep.subr.bf16.mxu0 0
    %236 = vmatpush1.bf16.msra.mxu0 0
    %237 = vmatprep.subr.bf16.mxu0 0
    %238 = vmatpush1.bf16.msra.mxu0 0
    %239 = vmatprep.subr.bf16.mxu0 0
    %240 = vmatpush1.bf16.msra.mxu0 0
    %241 = vmatprep.subr.bf16.mxu0 0
    %242 = vmatpush1.bf16.msra.mxu0 0
    %243 = vmatprep.mubr.bf16.mxu0 0
    %244 = vmatmul.mubr.bf16.gmra.mrb[0].mxu0 %v129
    %v245 = vpop.f32.mrb[0].mxu0
    %v246 = vadd.f32 %v118, %v245
    %v247 = vpop.f32.mrb[0].mxu0
    %v248 = vadd.f32 %v122, %v247
    %v249 = vpop.f32.mrb[0].mxu0
    %v250 = vadd.f32 %v118, %v249
    %v251 = vpop.f32.mrb[0].mxu0
    %v252 = vadd.f32 %v122, %v251
    %253 = vdwg.mxu0
    %v254 = vld [vmem:[%s3] sm:$0x3]
    %v255 = vld [vmem:[%s4] sm:$0x3]
    %v256 = vadd.f32 %v246, %v248
    %257 = vadd.xlane.f32.xlu0 %v256
    %v258 = vpop.xlane.xlu0 %257
    %v259 = vadd.f32 %v250, %v252
    %260 = vadd.xlane.f32.xlu0 %v259
    %v261 = vpop.xlane.xlu0 %260
    %v262 = vrcp.pop 256.0
    %v263 = vmul.f32 %v258, %v262
    %v264 = vmul.f32 %v261, %v262
    %v265 = vmul.f32 %v246, %v246
    %v266 = vmul.f32 %v248, %v248
    %v267 = vmul.f32 %v250, %v250
    %v268 = vmul.f32 %v252, %v252
    %v269 = vadd.f32 %v265, %v266
    %270 = vadd.xlane.f32.xlu0 %v269
    %v271 = vpop.xlane.xlu0 %270
    %v272 = vadd.f32 %v267, %v268
    %273 = vadd.xlane.f32.xlu0 %v272
    %v274 = vpop.xlane.xlu0 %273
    %v275 = vmul.f32 %v271, %v262
    %v276 = vmul.f32 %v274, %v262
    %v277 = vmul.f32 %v263, %v263
    %v278 = vmul.f32 %v264, %v264
    %v279 = vsub.f32 %v275, %v277
    %v280 = vsub.f32 %v276, %v278
    %v281 = vmax.f32 %v279, 0.0
    %v282 = vmax.f32 %v280, 0.0
    %v283 = vsub.f32 %v246, %v263
    %v284 = vsub.f32 %v248, %v263
    %v285 = vsub.f32 %v250, %v264
    %v286 = vsub.f32 %v252, %v264
    %v287 = vadd.f32 %v281, 1e-05
    %v288 = vadd.f32 %v282, 1e-05
    %v289 = vrsqrt.pop %v287
    %v290 = vrsqrt.pop %v288
    %v291 = vmul.f32 %v283, %v289
    %v292 = vmul.f32 %v284, %v289
    %v293 = vmul.f32 %v285, %v290
    %v294 = vmul.f32 %v286, %v290
    %v296 = vlaneseq
    %v297 = vshrl.u32 %v296, 7
    %v298 = vsub.s32 0, %v297
    %v299 = vrot.slane %v254, %v298
    %v300 = vlaneseq
    %v301 = vshrl.u32 %v300, 7
    %v302 = vsub.s32 1, %v301
    %v303 = vrot.slane %v254, %v302
    %v306 = vmul.f32 %v291, %v299
    %v307 = vmul.f32 %v292, %v303
    %v308 = vmul.f32 %v293, %v299
    %v309 = vmul.f32 %v294, %v303
    %v311 = vlaneseq
    %v312 = vshrl.u32 %v311, 7
    %v313 = vsub.s32 0, %v312
    %v314 = vrot.slane %v255, %v313
    %v315 = vlaneseq
    %v316 = vshrl.u32 %v315, 7
    %v317 = vsub.s32 1, %v316
    %v318 = vrot.slane %v255, %v317
    %v321 = vadd.f32 %v306, %v314
    %v322 = vadd.f32 %v307, %v318
    %v323 = vadd.f32 %v308, %v314
    %v324 = vadd.f32 %v309, %v318
    %v325 = vmax.f32 %v321, 0.0
    %v326 = vmax.f32 %v322, 0.0
    %v327 = vmax.f32 %v323, 0.0
    %v328 = vmax.f32 %v324, 0.0
    %v329 = vpack.c.bf16 %v327, %v325
    %v330 = vpack.c.bf16 %v328, %v326
    %v331 = vld [vmem:[#allocation7] sm:$0xff]
    %v332 = vld [vmem:[#allocation7 + $0x8] sm:$0xff]
    %v333 = vld [vmem:[#allocation7 + $0x10] sm:$0xff]
    %v334 = vld [vmem:[#allocation7 + $0x18] sm:$0xff]
    %v335 = vld [vmem:[#allocation7 + $0x20] sm:$0xff]
    %v336 = vld [vmem:[#allocation7 + $0x28] sm:$0xff]
    %v337 = vld [vmem:[#allocation7 + $0x30] sm:$0xff]
    %v338 = vld [vmem:[#allocation7 + $0x38] sm:$0xff]
    %v339 = vld [vmem:[#allocation7 + $0x40] sm:$0xff]
    %v340 = vld [vmem:[#allocation7 + $0x48] sm:$0xff]
    %v341 = vld [vmem:[#allocation7 + $0x50] sm:$0xff]
    %v342 = vld [vmem:[#allocation7 + $0x58] sm:$0xff]
    %v343 = vld [vmem:[#allocation7 + $0x60] sm:$0xff]
    %v344 = vld [vmem:[#allocation7 + $0x68] sm:$0xff]
    %v345 = vld [vmem:[#allocation7 + $0x70] sm:$0xff]
    %v346 = vld [vmem:[#allocation7 + $0x78] sm:$0xff]
    %v347 = vld [vmem:[#allocation7 + $0x80] sm:$0xff]
    %v348 = vld [vmem:[#allocation7 + $0x88] sm:$0xff]
    %v349 = vld [vmem:[#allocation7 + $0x90] sm:$0xff]
    %v350 = vld [vmem:[#allocation7 + $0x98] sm:$0xff]
    %v351 = vld [vmem:[#allocation7 + $0xa0] sm:$0xff]
    %v352 = vld [vmem:[#allocation7 + $0xa8] sm:$0xff]
    %v353 = vld [vmem:[#allocation7 + $0xb0] sm:$0xff]
    %v354 = vld [vmem:[#allocation7 + $0xb8] sm:$0xff]
    %v355 = vld [vmem:[#allocation7 + $0xc0] sm:$0xff]
    %v356 = vld [vmem:[#allocation7 + $0xc8] sm:$0xff]
    %v357 = vld [vmem:[#allocation7 + $0xd0] sm:$0xff]
    %v358 = vld [vmem:[#allocation7 + $0xd8] sm:$0xff]
    %v359 = vld [vmem:[#allocation7 + $0xe0] sm:$0xff]
    %v360 = vld [vmem:[#allocation7 + $0xe8] sm:$0xff]
    %v361 = vld [vmem:[#allocation7 + $0xf0] sm:$0xff]
    %v362 = vld [vmem:[#allocation7 + $0xf8] sm:$0xff]
    %v363 = vld [vmem:[%s6] sm:$0x3]
    %v365 = vlaneseq
    %v366 = vshrl.u32 %v365, 7
    %v367 = vsub.s32 0, %v366
    %v368 = vrot.slane %v363, %v367
    %v369 = vlaneseq
    %v370 = vshrl.u32 %v369, 7
    %v371 = vsub.s32 1, %v370
    %v372 = vrot.slane %v363, %v371
    %v407 = vunpack.c.l.b16 %v331
    %v408 = vunpack.c.h.b16 %v331
    %v409 = vunpack.c.l.b16 %v332
    %v410 = vunpack.c.h.b16 %v332
    %v411 = vunpack.c.l.b16 %v333
    %v412 = vunpack.c.h.b16 %v333
    %v413 = vunpack.c.l.b16 %v334
    %v414 = vunpack.c.h.b16 %v334
    %v415 = vunpack.c.l.b16 %v335
    %v416 = vunpack.c.h.b16 %v335
    %v417 = vunpack.c.l.b16 %v336
    %v418 = vunpack.c.h.b16 %v336
    %v419 = vunpack.c.l.b16 %v337
    %v420 = vunpack.c.h.b16 %v337
    %v421 = vunpack.c.l.b16 %v338
    %v422 = vunpack.c.h.b16 %v338
    %v423 = vunpack.c.l.b16 %v339
    %v424 = vunpack.c.h.b16 %v339
    %v425 = vunpack.c.l.b16 %v340
    %v426 = vunpack.c.h.b16 %v340
    %v427 = vunpack.c.l.b16 %v341
    %v428 = vunpack.c.h.b16 %v341
    %v429 = vunpack.c.l.b16 %v342
    %v430 = vunpack.c.h.b16 %v342
    %v431 = vunpack.c.l.b16 %v343
    %v432 = vunpack.c.h.b16 %v343
    %v433 = vunpack.c.l.b16 %v344
    %v434 = vunpack.c.h.b16 %v344
    %v435 = vunpack.c.l.b16 %v345
    %v436 = vunpack.c.h.b16 %v345
    %v437 = vunpack.c.l.b16 %v346
    %v438 = vunpack.c.h.b16 %v346
    %v439 = vunpack.c.l.b16 %v347
    %v440 = vunpack.c.h.b16 %v347
    %v441 = vunpack.c.l.b16 %v348
    %v442 = vunpack.c.h.b16 %v348
    %v443 = vunpack.c.l.b16 %v349
    %v444 = vunpack.c.h.b16 %v349
    %v445 = vunpack.c.l.b16 %v350
    %v446 = vunpack.c.h.b16 %v350
    %v447 = vunpack.c.l.b16 %v351
    %v448 = vunpack.c.h.b16 %v351
    %v449 = vunpack.c.l.b16 %v352
    %v450 = vunpack.c.h.b16 %v352
    %v451 = vunpack.c.l.b16 %v353
    %v452 = vunpack.c.h.b16 %v353
    %v453 = vunpack.c.l.b16 %v354
    %v454 = vunpack.c.h.b16 %v354
    %v455 = vunpack.c.l.b16 %v355
    %v456 = vunpack.c.h.b16 %v355
    %v457 = vunpack.c.l.b16 %v356
    %v458 = vunpack.c.h.b16 %v356
    %v459 = vunpack.c.l.b16 %v357
    %v460 = vunpack.c.h.b16 %v357
    %v461 = vunpack.c.l.b16 %v358
    %v462 = vunpack.c.h.b16 %v358
    %v463 = vunpack.c.l.b16 %v359
    %v464 = vunpack.c.h.b16 %v359
    %v465 = vunpack.c.l.b16 %v360
    %v466 = vunpack.c.h.b16 %v360
    %v467 = vunpack.c.l.b16 %v361
    %v468 = vunpack.c.h.b16 %v361
    %v469 = vunpack.c.l.b16 %v362
    %v470 = vunpack.c.h.b16 %v362
    %v471 = vpack.c.b16 %v409, %v407
    %v472 = vpack.c.b16 %v410, %v408
    %v473 = vpack.c.b16 %v413, %v411
    %v474 = vpack.c.b16 %v414, %v412
    %v475 = vpack.c.b16 %v417, %v415
    %v476 = vpack.c.b16 %v418, %v416
    %v477 = vpack.c.b16 %v421, %v419
    %v478 = vpack.c.b16 %v422, %v420
    %v479 = vpack.c.b16 %v425, %v423
    %v480 = vpack.c.b16 %v426, %v424
    %v481 = vpack.c.b16 %v429, %v427
    %v482 = vpack.c.b16 %v430, %v428
    %v483 = vpack.c.b16 %v433, %v431
    %v484 = vpack.c.b16 %v434, %v432
    %v485 = vpack.c.b16 %v437, %v435
    %v486 = vpack.c.b16 %v438, %v436
    %v487 = vpack.c.b16 %v441, %v439
    %v488 = vpack.c.b16 %v442, %v440
    %v489 = vpack.c.b16 %v445, %v443
    %v490 = vpack.c.b16 %v446, %v444
    %v491 = vpack.c.b16 %v449, %v447
    %v492 = vpack.c.b16 %v450, %v448
    %v493 = vpack.c.b16 %v453, %v451
    %v494 = vpack.c.b16 %v454, %v452
    %v495 = vpack.c.b16 %v457, %v455
    %v496 = vpack.c.b16 %v458, %v456
    %v497 = vpack.c.b16 %v461, %v459
    %v498 = vpack.c.b16 %v462, %v460
    %v499 = vpack.c.b16 %v465, %v463
    %v500 = vpack.c.b16 %v466, %v464
    %v501 = vpack.c.b16 %v469, %v467
    %v502 = vpack.c.b16 %v470, %v468
    %535 = vmatprep.subr.bf16.mxu0 %v472
    %536 = vmatpush1.bf16.msra.mxu0 %v471
    %537 = vmatprep.subr.bf16.mxu0 %v474
    %538 = vmatpush1.bf16.msra.mxu0 %v473
    %539 = vmatprep.subr.bf16.mxu0 %v476
    %540 = vmatpush1.bf16.msra.mxu0 %v475
    %541 = vmatprep.subr.bf16.mxu0 %v478
    %542 = vmatpush1.bf16.msra.mxu0 %v477
    %543 = vmatprep.subr.bf16.mxu0 %v480
    %544 = vmatpush1.bf16.msra.mxu0 %v479
    %545 = vmatprep.subr.bf16.mxu0 %v482
    %546 = vmatpush1.bf16.msra.mxu0 %v481
    %547 = vmatprep.subr.bf16.mxu0 %v484
    %548 = vmatpush1.bf16.msra.mxu0 %v483
    %549 = vmatprep.subr.bf16.mxu0 %v486
    %550 = vmatpush1.bf16.msra.mxu0 %v485
    %551 = vmatprep.subr.bf16.mxu0 %v488
    %552 = vmatpush1.bf16.msra.mxu0 %v487
    %553 = vmatprep.subr.bf16.mxu0 %v490
    %554 = vmatpush1.bf16.msra.mxu0 %v489
    %555 = vmatprep.subr.bf16.mxu0 %v492
    %556 = vmatpush1.bf16.msra.mxu0 %v491
    %557 = vmatprep.subr.bf16.mxu0 %v494
    %558 = vmatpush1.bf16.msra.mxu0 %v493
    %559 = vmatprep.subr.bf16.mxu0 %v496
    %560 = vmatpush1.bf16.msra.mxu0 %v495
    %561 = vmatprep.subr.bf16.mxu0 %v498
    %562 = vmatpush1.bf16.msra.mxu0 %v497
    %563 = vmatprep.subr.bf16.mxu0 %v500
    %564 = vmatpush1.bf16.msra.mxu0 %v499
    %565 = vmatprep.subr.bf16.mxu0 %v502
    %566 = vmatpush1.bf16.msra.mxu0 %v501
    %567 = vmatprep.mubr.bf16.mxu0 %v330
    %568 = vmatmul.mubr.bf16.gmra.mrb[0].mxu0 %v329
    %v569 = vpop.f32.mrb[0].mxu0
    %v570 = vadd.f32 %v368, %v569
    %v571 = vpop.f32.mrb[0].mxu0
    %v572 = vadd.f32 %v372, %v571
    %v573 = vpop.f32.mrb[0].mxu0
    %v574 = vadd.f32 %v368, %v573
    %v575 = vpop.f32.mrb[0].mxu0
    %v576 = vadd.f32 %v372, %v575
    %577 = vdwg.mxu0
    %v578 = vld [vmem:[%s7] sm:$0x3]
    %v579 = vld [vmem:[%s8] sm:$0x3]
    %v580 = vadd.f32 %v570, %v572
    %581 = vadd.xlane.f32.xlu0 %v580
    %v582 = vpop.xlane.xlu0 %581
    %v583 = vadd.f32 %v574, %v576
    %584 = vadd.xlane.f32.xlu0 %v583
    %v585 = vpop.xlane.xlu0 %584
    %v586 = vmul.f32 %v582, %v262
    %v587 = vmul.f32 %v585, %v262
    %v588 = vmul.f32 %v570, %v570
    %v589 = vmul.f32 %v572, %v572
    %v590 = vmul.f32 %v574, %v574
    %v591 = vmul.f32 %v576, %v576
    %v592 = vadd.f32 %v588, %v589
    %593 = vadd.xlane.f32.xlu0 %v592
    %v594 = vpop.xlane.xlu0 %593
    %v595 = vadd.f32 %v590, %v591
    %596 = vadd.xlane.f32.xlu0 %v595
    %v597 = vpop.xlane.xlu0 %596
    %v598 = vmul.f32 %v594, %v262
    %v599 = vmul.f32 %v597, %v262
    %v600 = vmul.f32 %v586, %v586
    %v601 = vmul.f32 %v587, %v587
    %v602 = vsub.f32 %v598, %v600
    %v603 = vsub.f32 %v599, %v601
    %v604 = vmax.f32 %v602, 0.0
    %v605 = vmax.f32 %v603, 0.0
    %v606 = vsub.f32 %v570, %v586
    %v607 = vsub.f32 %v572, %v586
    %v608 = vsub.f32 %v574, %v587
    %v609 = vsub.f32 %v576, %v587
    %v610 = vadd.f32 %v604, 1e-05
    %v611 = vadd.f32 %v605, 1e-05
    %v612 = vrsqrt.pop %v610
    %v613 = vrsqrt.pop %v611
    %v614 = vmul.f32 %v606, %v612
    %v615 = vmul.f32 %v607, %v612
    %v616 = vmul.f32 %v608, %v613
    %v617 = vmul.f32 %v609, %v613
    %v619 = vlaneseq
    %v620 = vshrl.u32 %v619, 7
    %v621 = vsub.s32 0, %v620
    %v622 = vrot.slane %v578, %v621
    %v623 = vlaneseq
    %v624 = vshrl.u32 %v623, 7
    %v625 = vsub.s32 1, %v624
    %v626 = vrot.slane %v578, %v625
    %v629 = vmul.f32 %v614, %v622
    %v630 = vmul.f32 %v615, %v626
    %v631 = vmul.f32 %v616, %v622
    %v632 = vmul.f32 %v617, %v626
    %v634 = vlaneseq
    %v635 = vshrl.u32 %v634, 7
    %v636 = vsub.s32 0, %v635
    %v637 = vrot.slane %v579, %v636
    %v638 = vlaneseq
    %v639 = vshrl.u32 %v638, 7
    %v640 = vsub.s32 1, %v639
    %v641 = vrot.slane %v579, %v640
    %v644 = vadd.f32 %v629, %v637
    %v645 = vadd.f32 %v630, %v641
    %v646 = vadd.f32 %v631, %v637
    %v647 = vadd.f32 %v632, %v641
    %v648 = vmax.f32 %v644, 0.0
    %v649 = vmax.f32 %v645, 0.0
    %v650 = vmax.f32 %v646, 0.0
    %v651 = vmax.f32 %v647, 0.0
    %v652 = vpack.c.bf16 %v650, %v648
    %v653 = vpack.c.bf16 %v651, %v649
    %v654 = vld [vmem:[#allocation8] sm:$0xf]
    %v655 = vld [vmem:[#allocation8 + $0x4] sm:$0xf]
    %v656 = vld [vmem:[#allocation8 + $0x8] sm:$0xf]
    %v657 = vld [vmem:[#allocation8 + $0xc] sm:$0xf]
    %v658 = vld [vmem:[#allocation8 + $0x10] sm:$0xf]
    %v659 = vld [vmem:[#allocation8 + $0x14] sm:$0xf]
    %v660 = vld [vmem:[#allocation8 + $0x18] sm:$0xf]
    %v661 = vld [vmem:[#allocation8 + $0x1c] sm:$0xf]
    %v662 = vld [vmem:[#allocation8 + $0x20] sm:$0xf]
    %v663 = vld [vmem:[#allocation8 + $0x24] sm:$0xf]
    %v664 = vld [vmem:[#allocation8 + $0x28] sm:$0xf]
    %v665 = vld [vmem:[#allocation8 + $0x2c] sm:$0xf]
    %v666 = vld [vmem:[#allocation8 + $0x30] sm:$0xf]
    %v667 = vld [vmem:[#allocation8 + $0x34] sm:$0xf]
    %v668 = vld [vmem:[#allocation8 + $0x38] sm:$0xf]
    %v669 = vld [vmem:[#allocation8 + $0x3c] sm:$0xf]
    %v670 = vld [vmem:[#allocation8 + $0x40] sm:$0xf]
    %v671 = vld [vmem:[#allocation8 + $0x44] sm:$0xf]
    %v672 = vld [vmem:[#allocation8 + $0x48] sm:$0xf]
    %v673 = vld [vmem:[#allocation8 + $0x4c] sm:$0xf]
    %v674 = vld [vmem:[#allocation8 + $0x50] sm:$0xf]
    %v675 = vld [vmem:[#allocation8 + $0x54] sm:$0xf]
    %v676 = vld [vmem:[#allocation8 + $0x58] sm:$0xf]
    %v677 = vld [vmem:[#allocation8 + $0x5c] sm:$0xf]
    %v678 = vld [vmem:[#allocation8 + $0x60] sm:$0xf]
    %v679 = vld [vmem:[#allocation8 + $0x64] sm:$0xf]
    %v680 = vld [vmem:[#allocation8 + $0x68] sm:$0xf]
    %v681 = vld [vmem:[#allocation8 + $0x6c] sm:$0xf]
    %v682 = vld [vmem:[#allocation8 + $0x70] sm:$0xf]
    %v683 = vld [vmem:[#allocation8 + $0x74] sm:$0xf]
    %v684 = vld [vmem:[#allocation8 + $0x78] sm:$0xf]
    %v685 = vld [vmem:[#allocation8 + $0x7c] sm:$0xf]
    %v686 = vld [vmem:[%s10] sm:$0x1]
    %v688 = vlaneseq
    %v689 = vshrl.u32 %v688, 7
    %v690 = vsub.s32 0, %v689
    %v691 = vrot.slane %v686, %v690
    %v725 = vunpack.c.l.b16 %v654
    %v726 = vunpack.c.l.b16 %v655
    %v727 = vunpack.c.l.b16 %v656
    %v728 = vunpack.c.l.b16 %v657
    %v729 = vunpack.c.l.b16 %v658
    %v730 = vunpack.c.l.b16 %v659
    %v731 = vunpack.c.l.b16 %v660
    %v732 = vunpack.c.l.b16 %v661
    %v733 = vunpack.c.l.b16 %v662
    %v734 = vunpack.c.l.b16 %v663
    %v735 = vunpack.c.l.b16 %v664
    %v736 = vunpack.c.l.b16 %v665
    %v737 = vunpack.c.l.b16 %v666
    %v738 = vunpack.c.l.b16 %v667
    %v739 = vunpack.c.l.b16 %v668
    %v740 = vunpack.c.l.b16 %v669
    %v741 = vunpack.c.l.b16 %v670
    %v742 = vunpack.c.l.b16 %v671
    %v743 = vunpack.c.l.b16 %v672
    %v744 = vunpack.c.l.b16 %v673
    %v745 = vunpack.c.l.b16 %v674
    %v746 = vunpack.c.l.b16 %v675
    %v747 = vunpack.c.l.b16 %v676
    %v748 = vunpack.c.l.b16 %v677
    %v749 = vunpack.c.l.b16 %v678
    %v750 = vunpack.c.l.b16 %v679
    %v751 = vunpack.c.l.b16 %v680
    %v752 = vunpack.c.l.b16 %v681
    %v753 = vunpack.c.l.b16 %v682
    %v754 = vunpack.c.l.b16 %v683
    %v755 = vunpack.c.l.b16 %v684
    %v756 = vunpack.c.l.b16 %v685
    %v757 = vpack.c.b16 %v726, %v725
    %v758 = vpack.c.b16 %v728, %v727
    %v759 = vpack.c.b16 %v730, %v729
    %v760 = vpack.c.b16 %v732, %v731
    %v761 = vpack.c.b16 %v734, %v733
    %v762 = vpack.c.b16 %v736, %v735
    %v763 = vpack.c.b16 %v738, %v737
    %v764 = vpack.c.b16 %v740, %v739
    %v765 = vpack.c.b16 %v742, %v741
    %v766 = vpack.c.b16 %v744, %v743
    %v767 = vpack.c.b16 %v746, %v745
    %v768 = vpack.c.b16 %v748, %v747
    %v769 = vpack.c.b16 %v750, %v749
    %v770 = vpack.c.b16 %v752, %v751
    %v771 = vpack.c.b16 %v754, %v753
    %v772 = vpack.c.b16 %v756, %v755
    %789 = vmatprep.subr.bf16.mxu0 0
    %790 = vmatpush1.bf16.msra.mxu0 %v757
    %791 = vmatprep.subr.bf16.mxu0 0
    %792 = vmatpush1.bf16.msra.mxu0 %v758
    %793 = vmatprep.subr.bf16.mxu0 0
    %794 = vmatpush1.bf16.msra.mxu0 %v759
    %795 = vmatprep.subr.bf16.mxu0 0
    %796 = vmatpush1.bf16.msra.mxu0 %v760
    %797 = vmatprep.subr.bf16.mxu0 0
    %798 = vmatpush1.bf16.msra.mxu0 %v761
    %799 = vmatprep.subr.bf16.mxu0 0
    %800 = vmatpush1.bf16.msra.mxu0 %v762
    %801 = vmatprep.subr.bf16.mxu0 0
    %802 = vmatpush1.bf16.msra.mxu0 %v763
    %803 = vmatprep.subr.bf16.mxu0 0
    %804 = vmatpush1.bf16.msra.mxu0 %v764
    %805 = vmatprep.subr.bf16.mxu0 0
    %806 = vmatpush1.bf16.msra.mxu0 %v765
    %807 = vmatprep.subr.bf16.mxu0 0
    %808 = vmatpush1.bf16.msra.mxu0 %v766
    %809 = vmatprep.subr.bf16.mxu0 0
    %810 = vmatpush1.bf16.msra.mxu0 %v767
    %811 = vmatprep.subr.bf16.mxu0 0
    %812 = vmatpush1.bf16.msra.mxu0 %v768
    %813 = vmatprep.subr.bf16.mxu0 0
    %814 = vmatpush1.bf16.msra.mxu0 %v769
    %815 = vmatprep.subr.bf16.mxu0 0
    %816 = vmatpush1.bf16.msra.mxu0 %v770
    %817 = vmatprep.subr.bf16.mxu0 0
    %818 = vmatpush1.bf16.msra.mxu0 %v771
    %819 = vmatprep.subr.bf16.mxu0 0
    %820 = vmatpush1.bf16.msra.mxu0 %v772
    %821 = vmatprep.mubr.bf16.mxu0 %v653
    %822 = vmatmul.mubr.bf16.gmra.mrb[0].mxu0 %v652
    %v823 = vpop.f32.mrb[0].mxu0
    %v824 = vadd.f32 %v691, %v823
    %v825 = vpop.f32.mrb[0].mxu0
    %v826 = vpop.f32.mrb[0].mxu0
    %v827 = vadd.f32 %v691, %v826
    %v828 = vpop.f32.mrb[0].mxu0
    %829 = vdwg.mxu0
    %830 = vst [vmem:[#allocation10] sm:$0xff] %v824
    %831 = vst [vmem:[#allocation10 + $0x8] sm:$0xff] %v827
    // Predicated region
    $region62: #{tpu_custom_call.1} parent=1 // pred_check
      _
    $region63: #{tpu_custom_call.1} parent=1 // pred_check_branch
      %833 = sbr.rel (0) target = $region65
    $region64: #{tpu_custom_call.1} parent=1 // pred_region
      %s835 = ssub.s32 256, 256
      %836 = vsyncadd [#allocation4], %s835
      %s837 = sshll.u32 [#allocation10], 4
      %s838 = int_to_ptr.vmem [resolvable:$true] %s837
      %843 = dma.vmem_to_hbm [thread:$0]  %s838, 256, %s11, [#allocation4], 128, 128, 8
    $region65: #{tpu_custom_call.1} parent=1 // pred_fallthru
      _
    // Predicated region
    $region66: #{tpu_custom_call.1} parent=1 // pred_check
      _
    $region67: #{tpu_custom_call.1} parent=1 // pred_check_branch
      %845 = sbr.rel (0) target = $region69
    $region68: #{tpu_custom_call.1} parent=1 // pred_region
      %846 = dma.done [#allocation4], 256
    $region69: #{tpu_custom_call.1} parent=1 // pred_fallthru
      _
    %847 = vsyncpa [#allocation3], 1
    %848 = vsyncpa [#allocation6], 1
    %849 = vsyncpa [#allocation9], 1
    %850 = vsyncpa [#allocation4], 1

</llo_original>
